<compile_context>
chip_gen: v7x
topology: tpu7x:2x2x1
jax: 0.10.0
libtpu: 0.0.40
codegen_flags: <defaults>
</compile_context>

<pallas_src>
import functools

import jax
import jax.numpy as jnp
from jax.experimental import pallas as pl
from jax.experimental.pallas import tpu as pltpu


def _round_up(x, m):
    return (x + m - 1) // m * m


def _autoencoder_kernel(
    x_ref,
    w1_ref, b1_ref, w2_ref, b2_ref, w3_ref, b3_ref,      # encoder params
    w4_ref, b4_ref, w5_ref, b5_ref, w6_ref, b6_ref,      # decoder params
    o_ref,
):
    """Fused MLP forward on one (block_m, D_pad) batch tile.

    Matmul inputs are bf16; accumulation + elementwise work are f32.
    """

    def dense(h_bf16, w_ref, b_ref, *, relu):
        y = jnp.dot(h_bf16, w_ref[...], preferred_element_type=jnp.float32)
        y = y + b_ref[...]
        if relu:
            y = jnp.maximum(y, 0.0)
        return y

    h = x_ref[...]                                              # bf16 (block_m, D_pad)

    # ---- encoder ----
    h = dense(h, w1_ref, b1_ref, relu=True).astype(jnp.bfloat16)
    h = dense(h, w2_ref, b2_ref, relu=True).astype(jnp.bfloat16)
    h = dense(h, w3_ref, b3_ref, relu=False).astype(jnp.bfloat16)

    # ---- decoder ----
    h = dense(h, w4_ref, b4_ref, relu=True).astype(jnp.bfloat16)
    h = dense(h, w5_ref, b5_ref, relu=True).astype(jnp.bfloat16)
    z = dense(h, w6_ref, b6_ref, relu=False)                    # f32

    # sigmoid(z) = 1 / (1 + exp(-z)); exp + approximate reciprocal both run on EUP.
    o_ref[...] = pl.reciprocal(1.0 + jnp.exp(-z), approx=True).astype(o_ref.dtype)


@functools.partial(jax.jit, static_argnames=("block_m",))
def autoencoder_forward(x, params, *, block_m=None):
    B, D = x.shape
    out_dtype = x.dtype
    D_pad = _round_up(max(D, 1), 128)                 # lane-dense feature axis

    # ---- batch tile sizing -------------------------------------------------
    if block_m is None:
        # Big tiles (amortize per-step overhead, fill MXU rows); multiple of 16
        # for bf16 sublane packing; clamp against VMEM (double-buffered bf16
        # I/O tiles + f32 intermediates), conservative for v7x's 64 MiB VMEM.
        block_m = min(512, _round_up(B, 16))
        while block_m > 16 and block_m * D_pad * 4 * 8 > 32 * 1024 * 1024:
            block_m //= 2
        block_m = max(16, (block_m // 16) * 16)
    B_pad = _round_up(B, block_m)
    grid = (B_pad // block_m,)

    # ---- pad / cast inputs and parameters -----------------------------------
    xp = jnp.pad(x.astype(jnp.bfloat16), ((0, B_pad - B), (0, D_pad - D)))

    (w1, b1), (w2, b2), (w3, b3), (w4, b4), (w5, b5), (w6, b6) = params
    w1p = jnp.pad(w1, ((0, D_pad - D), (0, 0)))       # zero rows: padded x cols are inert
    w6p = jnp.pad(w6, ((0, 0), (0, D_pad - D)))       # zero cols: padded outputs sliced off
    b6p = jnp.pad(b6, ((0, 0), (0, D_pad - D)))

    weights = [w1p, w2, w3, w4, w5, w6p]
    biases = [b1, b2, b3, b4, b5, b6p]
    flat_params = []
    for w, b in zip(weights, biases):
        flat_params.append(w.astype(jnp.bfloat16))    # MXU inputs in bf16
        flat_params.append(b.astype(jnp.float32))     # biases stay f32

    # ---- specs ---------------------------------------------------------------
    def full_spec(arr):
        # Constant index map -> fetched once, resident in VMEM for all grid steps.
        return pl.BlockSpec(arr.shape, lambda i: (0, 0))

    in_specs = [pl.BlockSpec((block_m, D_pad), lambda i: (i, 0))]
    in_specs += [full_spec(a) for a in flat_params]
    out_specs = pl.BlockSpec((block_m, D_pad), lambda i: (i, 0))

    # ---- advisory cost estimate ----------------------------------------------
    layer_dims = [(D_pad, 64), (64, 32), (32, 16), (16, 32), (32, 64), (64, D_pad)]
    flops = 2 * B_pad * sum(fi * fo for fi, fo in layer_dims)
    bytes_accessed = int(
        xp.size * xp.dtype.itemsize
        + B_pad * D_pad * jnp.dtype(out_dtype).itemsize
        + sum(a.size * a.dtype.itemsize for a in flat_params)
    )
    cost = pl.CostEstimate(
        flops=int(flops),
        transcendentals=int(2 * B_pad * D_pad),
        bytes_accessed=bytes_accessed,
    )

    out = pl.pallas_call(
        _autoencoder_kernel,
        out_shape=jax.ShapeDtypeStruct((B_pad, D_pad), out_dtype),
        grid_spec=pltpu.PrefetchScalarGridSpec(
            num_scalar_prefetch=0,
            grid=grid,
            in_specs=in_specs,
            out_specs=out_specs,
        ),
        compiler_params=pltpu.CompilerParams(
            dimension_semantics=("parallel",),        # batch axis shards across TCs
            vmem_limit_bytes=48 * 1024 * 1024,
        ),
        cost_estimate=cost,
    )(xp, *flat_params)

    return out[:B, :D]


def init_params(key, input_dim):
    """Deterministic parameter init. Weights [in, out]; bias [1, out]."""
    dims = [
        (input_dim, 64), (64, 32), (32, 16),   # encoder
        (16, 32), (32, 64), (64, input_dim),   # decoder
    ]
    params = []
    for fan_in, fan_out in dims:
        key, kw, kb = jax.random.split(key, 3)
        bound = 1.0 / (fan_in ** 0.5)
        w = jax.random.uniform(kw, (fan_in, fan_out), jnp.float32, -bound, bound)
        b = jax.random.uniform(kb, (1, fan_out), jnp.float32, -bound, bound)
        params.append((w, b))
    return params


def reference_forward(x, params):
    """Plain-JAX reference mirroring the kernel's bf16-matmul / f32-accumulate numerics."""
    h = x
    for idx, (w, b) in enumerate(params):
        h = jnp.dot(h.astype(jnp.bfloat16), w.astype(jnp.bfloat16),
                    preferred_element_type=jnp.float32) + b
        if idx not in (2, 5):                    # all layers except layer 3 and 6 have ReLU
            h = jnp.maximum(h, 0.0)
    return jax.nn.sigmoid(h)


if __name__ == "__main__":
    key = jax.random.PRNGKey(0)
    k_x, k_p = jax.random.split(key)

    batch, input_dim = 50, 32                    # exercises batch + feature padding
    x = jax.random.uniform(k_x, (batch, input_dim), jnp.float32)
    params = init_params(k_p, input_dim)

    out = jax.block_until_ready(autoencoder_forward(x, params))
    ref = reference_forward(x, params)

    assert out.shape == (batch, input_dim)
    assert bool(jnp.all(jnp.isfinite(out)))
    assert jnp.allclose(out, ref, atol=2e-2, rtol=2e-2), "mismatch vs reference"

    # Multi-step grid (B >> block_m) exercises pipelining + batch padding paths.
    out_tiled = jax.block_until_ready(autoencoder_forward(x, params, block_m=16))
    assert jnp.allclose(out_tiled, out, atol=1e-5, rtol=1e-5), "tiling changed results"

    print("KERNEL_OK")
</pallas_src>

<mosaic_0001>
module attributes {stable_mosaic.version = 11 : i64} {
  func.func @_autoencoder_kernel(%arg0: i32, %arg1: memref<64x128xbf16, #tpu.memory_space<vmem>>, %arg2: memref<128x64xbf16, #tpu.memory_space<vmem>>, %arg3: memref<1x64xf32, #tpu.memory_space<vmem>>, %arg4: memref<64x32xbf16, #tpu.memory_space<vmem>>, %arg5: memref<1x32xf32, #tpu.memory_space<vmem>>, %arg6: memref<32x16xbf16, #tpu.memory_space<vmem>>, %arg7: memref<1x16xf32, #tpu.memory_space<vmem>>, %arg8: memref<16x32xbf16, #tpu.memory_space<vmem>>, %arg9: memref<1x32xf32, #tpu.memory_space<vmem>>, %arg10: memref<32x64xbf16, #tpu.memory_space<vmem>>, %arg11: memref<1x64xf32, #tpu.memory_space<vmem>>, %arg12: memref<64x128xbf16, #tpu.memory_space<vmem>>, %arg13: memref<1x128xf32, #tpu.memory_space<vmem>>, %arg14: memref<64x128xf32, #tpu.memory_space<vmem>>) attributes {dimension_semantics = [#tpu.dimension_semantics<parallel>], iteration_bounds = array<i64: 1>, scalar_prefetch = 0 : i64, scratch_operands = 0 : i64, tpu.core_type = #tpu.core_type<tc>, window_params = [{transform_indices = @transform_0, window_bounds = array<i64: 64, 128>}, {pipeline_mode = #tpu.pipeline_mode<synchronous>, transform_indices = @transform_1, window_bounds = array<i64: 128, 64>}, {pipeline_mode = #tpu.pipeline_mode<synchronous>, transform_indices = @transform_2, window_bounds = array<i64: 1, 64>}, {pipeline_mode = #tpu.pipeline_mode<synchronous>, transform_indices = @transform_3, window_bounds = array<i64: 64, 32>}, {pipeline_mode = #tpu.pipeline_mode<synchronous>, transform_indices = @transform_4, window_bounds = array<i64: 1, 32>}, {pipeline_mode = #tpu.pipeline_mode<synchronous>, transform_indices = @transform_5, window_bounds = array<i64: 32, 16>}, {pipeline_mode = #tpu.pipeline_mode<synchronous>, transform_indices = @transform_6, window_bounds = array<i64: 1, 16>}, {pipeline_mode = #tpu.pipeline_mode<synchronous>, transform_indices = @transform_7, window_bounds = array<i64: 16, 32>}, {pipeline_mode = #tpu.pipeline_mode<synchronous>, transform_indices = @transform_8, window_bounds = array<i64: 1, 32>}, {pipeline_mode = #tpu.pipeline_mode<synchronous>, transform_indices = @transform_9, window_bounds = array<i64: 32, 64>}, {pipeline_mode = #tpu.pipeline_mode<synchronous>, transform_indices = @transform_10, window_bounds = array<i64: 1, 64>}, {pipeline_mode = #tpu.pipeline_mode<synchronous>, transform_indices = @transform_11, window_bounds = array<i64: 64, 128>}, {pipeline_mode = #tpu.pipeline_mode<synchronous>, transform_indices = @transform_12, window_bounds = array<i64: 1, 128>}, {transform_indices = @transform_13, window_bounds = array<i64: 64, 128>}]} {
    %c0 = arith.constant 0 : index
    %c0_0 = arith.constant 0 : index
    %0 = vector.load %arg1[%c0, %c0_0] : memref<64x128xbf16, #tpu.memory_space<vmem>>, vector<64x128xbf16>
    %c0_1 = arith.constant 0 : index
    %c0_2 = arith.constant 0 : index
    %1 = vector.load %arg2[%c0_1, %c0_2] : memref<128x64xbf16, #tpu.memory_space<vmem>>, vector<128x64xbf16>
    %cst = arith.constant dense<0.000000e+00> : vector<64x64xf32>
    %2 = tpu.matmul %0, %1, %cst {dimension_numbers = #tpu.dot_dimension_numbers<[1], [0], [0], [1], [0, 0, 1, 1], [], []>} : vector<64x128xbf16>, vector<128x64xbf16>, vector<64x64xf32> -> vector<64x64xf32>
    %c0_3 = arith.constant 0 : index
    %c0_4 = arith.constant 0 : index
    %3 = vector.load %arg3[%c0_3, %c0_4] : memref<1x64xf32, #tpu.memory_space<vmem>>, vector<1x64xf32>
    %4 = vector.broadcast %3 : vector<1x64xf32> to vector<64x64xf32>
    %5 = arith.addf %2, %4 : vector<64x64xf32>
    %cst_5 = arith.constant 0.000000e+00 : f32
    %6 = vector.broadcast %cst_5 : f32 to vector<64x64xf32>
    %7 = arith.maximumf %5, %6 : vector<64x64xf32>
    %8 = arith.truncf %7 : vector<64x64xf32> to vector<64x64xbf16>
    %c0_6 = arith.constant 0 : index
    %c0_7 = arith.constant 0 : index
    %9 = vector.load %arg4[%c0_6, %c0_7] : memref<64x32xbf16, #tpu.memory_space<vmem>>, vector<64x32xbf16>
    %cst_8 = arith.constant dense<0.000000e+00> : vector<64x32xf32>
    %10 = tpu.matmul %8, %9, %cst_8 {dimension_numbers = #tpu.dot_dimension_numbers<[1], [0], [0], [1], [0, 0, 1, 1], [], []>} : vector<64x64xbf16>, vector<64x32xbf16>, vector<64x32xf32> -> vector<64x32xf32>
    %c0_9 = arith.constant 0 : index
    %c0_10 = arith.constant 0 : index
    %11 = vector.load %arg5[%c0_9, %c0_10] : memref<1x32xf32, #tpu.memory_space<vmem>>, vector<1x32xf32>
    %12 = vector.broadcast %11 : vector<1x32xf32> to vector<64x32xf32>
    %13 = arith.addf %10, %12 : vector<64x32xf32>
    %cst_11 = arith.constant 0.000000e+00 : f32
    %14 = vector.broadcast %cst_11 : f32 to vector<64x32xf32>
    %15 = arith.maximumf %13, %14 : vector<64x32xf32>
    %16 = arith.truncf %15 : vector<64x32xf32> to vector<64x32xbf16>
    %c0_12 = arith.constant 0 : index
    %c0_13 = arith.constant 0 : index
    %17 = vector.load %arg6[%c0_12, %c0_13] : memref<32x16xbf16, #tpu.memory_space<vmem>>, vector<32x16xbf16>
    %cst_14 = arith.constant dense<0.000000e+00> : vector<64x16xf32>
    %18 = tpu.matmul %16, %17, %cst_14 {dimension_numbers = #tpu.dot_dimension_numbers<[1], [0], [0], [1], [0, 0, 1, 1], [], []>} : vector<64x32xbf16>, vector<32x16xbf16>, vector<64x16xf32> -> vector<64x16xf32>
    %c0_15 = arith.constant 0 : index
    %c0_16 = arith.constant 0 : index
    %19 = vector.load %arg7[%c0_15, %c0_16] : memref<1x16xf32, #tpu.memory_space<vmem>>, vector<1x16xf32>
    %20 = vector.broadcast %19 : vector<1x16xf32> to vector<64x16xf32>
    %21 = arith.addf %18, %20 : vector<64x16xf32>
    %22 = arith.truncf %21 : vector<64x16xf32> to vector<64x16xbf16>
    %c0_17 = arith.constant 0 : index
    %c0_18 = arith.constant 0 : index
    %23 = vector.load %arg8[%c0_17, %c0_18] : memref<16x32xbf16, #tpu.memory_space<vmem>>, vector<16x32xbf16>
    %cst_19 = arith.constant dense<0.000000e+00> : vector<64x32xf32>
    %24 = tpu.matmul %22, %23, %cst_19 {dimension_numbers = #tpu.dot_dimension_numbers<[1], [0], [0], [1], [0, 0, 1, 1], [], []>} : vector<64x16xbf16>, vector<16x32xbf16>, vector<64x32xf32> -> vector<64x32xf32>
    %c0_20 = arith.constant 0 : index
    %c0_21 = arith.constant 0 : index
    %25 = vector.load %arg9[%c0_20, %c0_21] : memref<1x32xf32, #tpu.memory_space<vmem>>, vector<1x32xf32>
    %26 = vector.broadcast %25 : vector<1x32xf32> to vector<64x32xf32>
    %27 = arith.addf %24, %26 : vector<64x32xf32>
    %cst_22 = arith.constant 0.000000e+00 : f32
    %28 = vector.broadcast %cst_22 : f32 to vector<64x32xf32>
    %29 = arith.maximumf %27, %28 : vector<64x32xf32>
    %30 = arith.truncf %29 : vector<64x32xf32> to vector<64x32xbf16>
    %c0_23 = arith.constant 0 : index
    %c0_24 = arith.constant 0 : index
    %31 = vector.load %arg10[%c0_23, %c0_24] : memref<32x64xbf16, #tpu.memory_space<vmem>>, vector<32x64xbf16>
    %cst_25 = arith.constant dense<0.000000e+00> : vector<64x64xf32>
    %32 = tpu.matmul %30, %31, %cst_25 {dimension_numbers = #tpu.dot_dimension_numbers<[1], [0], [0], [1], [0, 0, 1, 1], [], []>} : vector<64x32xbf16>, vector<32x64xbf16>, vector<64x64xf32> -> vector<64x64xf32>
    %c0_26 = arith.constant 0 : index
    %c0_27 = arith.constant 0 : index
    %33 = vector.load %arg11[%c0_26, %c0_27] : memref<1x64xf32, #tpu.memory_space<vmem>>, vector<1x64xf32>
    %34 = vector.broadcast %33 : vector<1x64xf32> to vector<64x64xf32>
    %35 = arith.addf %32, %34 : vector<64x64xf32>
    %cst_28 = arith.constant 0.000000e+00 : f32
    %36 = vector.broadcast %cst_28 : f32 to vector<64x64xf32>
    %37 = arith.maximumf %35, %36 : vector<64x64xf32>
    %38 = arith.truncf %37 : vector<64x64xf32> to vector<64x64xbf16>
    %c0_29 = arith.constant 0 : index
    %c0_30 = arith.constant 0 : index
    %39 = vector.load %arg12[%c0_29, %c0_30] : memref<64x128xbf16, #tpu.memory_space<vmem>>, vector<64x128xbf16>
    %cst_31 = arith.constant dense<0.000000e+00> : vector<64x128xf32>
    %40 = tpu.matmul %38, %39, %cst_31 {dimension_numbers = #tpu.dot_dimension_numbers<[1], [0], [0], [1], [0, 0, 1, 1], [], []>} : vector<64x64xbf16>, vector<64x128xbf16>, vector<64x128xf32> -> vector<64x128xf32>
    %c0_32 = arith.constant 0 : index
    %c0_33 = arith.constant 0 : index
    %41 = vector.load %arg13[%c0_32, %c0_33] : memref<1x128xf32, #tpu.memory_space<vmem>>, vector<1x128xf32>
    %42 = vector.broadcast %41 : vector<1x128xf32> to vector<64x128xf32>
    %43 = arith.addf %40, %42 : vector<64x128xf32>
    %cst_34 = arith.constant 0.000000e+00 : f32
    %44 = vector.broadcast %cst_34 : f32 to vector<64x128xf32>
    %45 = arith.subf %44, %43 : vector<64x128xf32>
    %46 = math.exp %45 : vector<64x128xf32>
    %cst_35 = arith.constant 1.000000e+00 : f32
    %47 = vector.broadcast %cst_35 : f32 to vector<64x128xf32>
    %48 = arith.addf %47, %46 : vector<64x128xf32>
    %49 = tpu.reciprocal %48 {approx = true} : vector<64x128xf32> -> vector<64x128xf32>
    %c0_36 = arith.constant 0 : index
    %c0_37 = arith.constant 0 : index
    %50 = vector.load %arg14[%c0_36, %c0_37] : memref<64x128xf32, #tpu.memory_space<vmem>>, vector<64x128xf32>
    tpu.vector_store %arg14[%c0_36, %c0_37], %49 {strides = array<i32>} : memref<64x128xf32, #tpu.memory_space<vmem>>, vector<64x128xf32>,
    return
  }
  func.func @transform_0(%arg0: i32) -> (i32, i32) {
    %c0_i32 = arith.constant 0 : i32
    %c0_i32_0 = arith.constant 0 : i32
    return %arg0, %c0_i32 : i32, i32
  }
  func.func @transform_1(%arg0: i32) -> (i32, i32) {
    %c0_i32 = arith.constant 0 : i32
    %c0_i32_0 = arith.constant 0 : i32
    %c0_i32_1 = arith.constant 0 : i32
    return %c0_i32, %c0_i32_0 : i32, i32
  }
  func.func @transform_2(%arg0: i32) -> (i32, i32) {
    %c0_i32 = arith.constant 0 : i32
    %c0_i32_0 = arith.constant 0 : i32
    %c0_i32_1 = arith.constant 0 : i32
    return %c0_i32, %c0_i32_0 : i32, i32
  }
  func.func @transform_3(%arg0: i32) -> (i32, i32) {
    %c0_i32 = arith.constant 0 : i32
    %c0_i32_0 = arith.constant 0 : i32
    %c0_i32_1 = arith.constant 0 : i32
    return %c0_i32, %c0_i32_0 : i32, i32
  }
  func.func @transform_4(%arg0: i32) -> (i32, i32) {
    %c0_i32 = arith.constant 0 : i32
    %c0_i32_0 = arith.constant 0 : i32
    %c0_i32_1 = arith.constant 0 : i32
    return %c0_i32, %c0_i32_0 : i32, i32
  }
  func.func @transform_5(%arg0: i32) -> (i32, i32) {
    %c0_i32 = arith.constant 0 : i32
    %c0_i32_0 = arith.constant 0 : i32
    %c0_i32_1 = arith.constant 0 : i32
    return %c0_i32, %c0_i32_0 : i32, i32
  }
  func.func @transform_6(%arg0: i32) -> (i32, i32) {
    %c0_i32 = arith.constant 0 : i32
    %c0_i32_0 = arith.constant 0 : i32
    %c0_i32_1 = arith.constant 0 : i32
    return %c0_i32, %c0_i32_0 : i32, i32
  }
  func.func @transform_7(%arg0: i32) -> (i32, i32) {
    %c0_i32 = arith.constant 0 : i32
    %c0_i32_0 = arith.constant 0 : i32
    %c0_i32_1 = arith.constant 0 : i32
    return %c0_i32, %c0_i32_0 : i32, i32
  }
  func.func @transform_8(%arg0: i32) -> (i32, i32) {
    %c0_i32 = arith.constant 0 : i32
    %c0_i32_0 = arith.constant 0 : i32
    %c0_i32_1 = arith.constant 0 : i32
    return %c0_i32, %c0_i32_0 : i32, i32
  }
  func.func @transform_9(%arg0: i32) -> (i32, i32) {
    %c0_i32 = arith.constant 0 : i32
    %c0_i32_0 = arith.constant 0 : i32
    %c0_i32_1 = arith.constant 0 : i32
    return %c0_i32, %c0_i32_0 : i32, i32
  }
  func.func @transform_10(%arg0: i32) -> (i32, i32) {
    %c0_i32 = arith.constant 0 : i32
    %c0_i32_0 = arith.constant 0 : i32
    %c0_i32_1 = arith.constant 0 : i32
    return %c0_i32, %c0_i32_0 : i32, i32
  }
  func.func @transform_11(%arg0: i32) -> (i32, i32) {
    %c0_i32 = arith.constant 0 : i32
    %c0_i32_0 = arith.constant 0 : i32
    %c0_i32_1 = arith.constant 0 : i32
    return %c0_i32, %c0_i32_0 : i32, i32
  }
  func.func @transform_12(%arg0: i32) -> (i32, i32) {
    %c0_i32 = arith.constant 0 : i32
    %c0_i32_0 = arith.constant 0 : i32
    %c0_i32_1 = arith.constant 0 : i32
    return %c0_i32, %c0_i32_0 : i32, i32
  }
  func.func @transform_13(%arg0: i32) -> (i32, i32) {
    %c0_i32 = arith.constant 0 : i32
    %c0_i32_0 = arith.constant 0 : i32
    return %arg0, %c0_i32 : i32, i32
  }
}

</mosaic_0001>

<llo_original>
// kernel: autoencoder_forward.1
$region0: #{autoencoder_forward.1}
  #allocation0 [shape = 'u32[]', space=smem, size = 0x4, offset = 0x4, fixed_abs, tag = 'smem constant byte address 0x4 - core index']
  #allocation1 [shape = 'u32[144,128]{1,0:T(1,128)}', space=vmem, size = 0x12000, scoped, tag = 'internal scratch']
  %s0 = inlined_call_operand.vmem [shape: bf16[64,128], index: 0, kind: input, shape index: {}]
  %s1 = inlined_call_operand.vmem [shape: bf16[128,64], index: 1, kind: input, shape index: {}]
  %s2 = inlined_call_operand.vmem [shape: f32[1,64], index: 2, kind: input, shape index: {}]
  %s3 = inlined_call_operand.vmem [shape: bf16[64,32], index: 3, kind: input, shape index: {}]
  %s4 = inlined_call_operand.vmem [shape: f32[1,32], index: 4, kind: input, shape index: {}]
  %s5 = inlined_call_operand.vmem [shape: bf16[32,16], index: 5, kind: input, shape index: {}]
  %s6 = inlined_call_operand.vmem [shape: f32[1,16], index: 6, kind: input, shape index: {}]
  %s7 = inlined_call_operand.vmem [shape: bf16[16,32], index: 7, kind: input, shape index: {}]
  %s8 = inlined_call_operand.vmem [shape: f32[1,32], index: 8, kind: input, shape index: {}]
  %s9 = inlined_call_operand.vmem [shape: bf16[32,64], index: 9, kind: input, shape index: {}]
  %s10 = inlined_call_operand.vmem [shape: f32[1,64], index: 10, kind: input, shape index: {}]
  %s11 = inlined_call_operand.vmem [shape: bf16[64,128], index: 11, kind: input, shape index: {}]
  %s12 = inlined_call_operand.vmem [shape: f32[1,128], index: 12, kind: input, shape index: {}]
  %s13 = inlined_call_operand.vmem [shape: f32[64,128], index: 13, kind: output, shape index: {}]
  %s14 = sld [smem:[#allocation0]]
  $region62: #{autoencoder_forward.1} parent=0
    _
  %s16 = ssub.s32 1, %s14
  %s17 = scalar_select 0, %s16, %s14
  // Predicated region
  $region2: #{autoencoder_forward.1} parent=0 // pred_check
    _
  $region3: #{autoencoder_forward.1} parent=0 // pred_check_branch
    %19 = sbr.rel (0) target = $region5
  $region4: #{autoencoder_forward.1} parent=0 // pred_region
    _
  $region5: #{autoencoder_forward.1} parent=0 // pred_fallthru
    _
  // Predicated region
  $region6: #{autoencoder_forward.1} parent=0 // pred_check
    _
  $region7: #{autoencoder_forward.1} parent=0 // pred_check_branch
    %21 = sbr.rel (0) target = $region9
  $region8: #{autoencoder_forward.1} parent=0 // pred_region
    _
  $region9: #{autoencoder_forward.1} parent=0 // pred_fallthru
    _
  // Predicated region
  $region10: #{autoencoder_forward.1} parent=0 // pred_check
    _
  $region11: #{autoencoder_forward.1} parent=0 // pred_check_branch
    %23 = sbr.rel (0) target = $region13
  $region12: #{autoencoder_forward.1} parent=0 // pred_region
    _
  $region13: #{autoencoder_forward.1} parent=0 // pred_fallthru
    _
  // Predicated region
  $region14: #{autoencoder_forward.1} parent=0 // pred_check
    _
  $region15: #{autoencoder_forward.1} parent=0 // pred_check_branch
    %25 = sbr.rel (0) target = $region17
  $region16: #{autoencoder_forward.1} parent=0 // pred_region
    _
  $region17: #{autoencoder_forward.1} parent=0 // pred_fallthru
    _
  // Predicated region
  $region18: #{autoencoder_forward.1} parent=0 // pred_check
    _
  $region19: #{autoencoder_forward.1} parent=0 // pred_check_branch
    %27 = sbr.rel (0) target = $region21
  $region20: #{autoencoder_forward.1} parent=0 // pred_region
    _
  $region21: #{autoencoder_forward.1} parent=0 // pred_fallthru
    _
  // Predicated region
  $region22: #{autoencoder_forward.1} parent=0 // pred_check
    _
  $region23: #{autoencoder_forward.1} parent=0 // pred_check_branch
    %29 = sbr.rel (0) target = $region25
  $region24: #{autoencoder_forward.1} parent=0 // pred_region
    _
  $region25: #{autoencoder_forward.1} parent=0 // pred_fallthru
    _
  // Predicated region
  $region26: #{autoencoder_forward.1} parent=0 // pred_check
    _
  $region27: #{autoencoder_forward.1} parent=0 // pred_check_branch
    %31 = sbr.rel (0) target = $region29
  $region28: #{autoencoder_forward.1} parent=0 // pred_region
    _
  $region29: #{autoencoder_forward.1} parent=0 // pred_fallthru
    _
  // Predicated region
  $region30: #{autoencoder_forward.1} parent=0 // pred_check
    _
  $region31: #{autoencoder_forward.1} parent=0 // pred_check_branch
    %33 = sbr.rel (0) target = $region33
  $region32: #{autoencoder_forward.1} parent=0 // pred_region
    _
  $region33: #{autoencoder_forward.1} parent=0 // pred_fallthru
    _
  // Predicated region
  $region34: #{autoencoder_forward.1} parent=0 // pred_check
    _
  $region35: #{autoencoder_forward.1} parent=0 // pred_check_branch
    %35 = sbr.rel (0) target = $region37
  $region36: #{autoencoder_forward.1} parent=0 // pred_region
    _
  $region37: #{autoencoder_forward.1} parent=0 // pred_fallthru
    _
  // Predicated region
  $region38: #{autoencoder_forward.1} parent=0 // pred_check
    _
  $region39: #{autoencoder_forward.1} parent=0 // pred_check_branch
    %37 = sbr.rel (0) target = $region41
  $region40: #{autoencoder_forward.1} parent=0 // pred_region
    _
  $region41: #{autoencoder_forward.1} parent=0 // pred_fallthru
    _
  // Predicated region
  $region42: #{autoencoder_forward.1} parent=0 // pred_check
    _
  $region43: #{autoencoder_forward.1} parent=0 // pred_check_branch
    %39 = sbr.rel (0) target = $region45
  $region44: #{autoencoder_forward.1} parent=0 // pred_region
    _
  $region45: #{autoencoder_forward.1} parent=0 // pred_fallthru
    _
  // Predicated region
  $region46: #{autoencoder_forward.1} parent=0 // pred_check
    _
  $region47: #{autoencoder_forward.1} parent=0 // pred_check_branch
    %41 = sbr.rel (0) target = $region49
  $region48: #{autoencoder_forward.1} parent=0 // pred_region
    _
  $region49: #{autoencoder_forward.1} parent=0 // pred_fallthru
    _
  // Predicated region
  $region50: #{autoencoder_forward.1} parent=0 // pred_check
    _
  $region51: #{autoencoder_forward.1} parent=0 // pred_check_branch
    %43 = sbr.rel (0) target = $region53
  $region52: #{autoencoder_forward.1} parent=0 // pred_region
    _
  $region53: #{autoencoder_forward.1} parent=0 // pred_fallthru
    _
  %v45 = vld [vmem:[%s0] sm:$0xf]
  %v46 = vld [vmem:[%s0 + $0x4] sm:$0xf]
  %v47 = vld [vmem:[%s0 + $0x8] sm:$0xf]
  %v48 = vld [vmem:[%s0 + $0xc] sm:$0xf]
  %v49 = vld [vmem:[%s0 + $0x10] sm:$0xf]
  %v50 = vld [vmem:[%s0 + $0x14] sm:$0xf]
  %v51 = vld [vmem:[%s0 + $0x18] sm:$0xf]
  %v52 = vld [vmem:[%s0 + $0x1c] sm:$0xf]
  %v53 = vld [vmem:[%s1] sm:$0xf]
  %v54 = vld [vmem:[%s1 + $0x4] sm:$0xf]
  %v55 = vld [vmem:[%s1 + $0x8] sm:$0xf]
  %v56 = vld [vmem:[%s1 + $0xc] sm:$0xf]
  %v57 = vld [vmem:[%s1 + $0x10] sm:$0xf]
  %v58 = vld [vmem:[%s1 + $0x14] sm:$0xf]
  %v59 = vld [vmem:[%s1 + $0x18] sm:$0xf]
  %v60 = vld [vmem:[%s1 + $0x1c] sm:$0xf]
  %v61 = vld [vmem:[%s1 + $0x20] sm:$0xf]
  %v62 = vld [vmem:[%s1 + $0x24] sm:$0xf]
  %v63 = vld [vmem:[%s1 + $0x28] sm:$0xf]
  %v64 = vld [vmem:[%s1 + $0x2c] sm:$0xf]
  %v65 = vld [vmem:[%s1 + $0x30] sm:$0xf]
  %v66 = vld [vmem:[%s1 + $0x34] sm:$0xf]
  %v67 = vld [vmem:[%s1 + $0x38] sm:$0xf]
  %v68 = vld [vmem:[%s1 + $0x3c] sm:$0xf]
  %v69 = vld [vmem:[%s2] sm:$0x1]
  %v71 = vlaneseq
  %v72 = vshrl.u32 %v71, 7
  %v73 = vsub.s32 0, %v72
  %v74 = vrot.slane %v69, %v73
  %v84 = vunpack.c.l.b16 %v45
  %v85 = vunpack.c.l.b16 %v46
  %v86 = vunpack.c.l.b16 %v47
  %v87 = vunpack.c.l.b16 %v48
  %v88 = vunpack.c.l.b16 %v49
  %v89 = vunpack.c.l.b16 %v50
  %v90 = vunpack.c.l.b16 %v51
  %v91 = vunpack.c.l.b16 %v52
  %v92 = vpack.c.b16 %v85, %v84
  %v93 = vpack.c.b16 %v87, %v86
  %v94 = vpack.c.b16 %v89, %v88
  %v95 = vpack.c.b16 %v91, %v90
  %v116 = vunpack.c.l.b16 %v53
  %v117 = vunpack.c.l.b16 %v54
  %v118 = vunpack.c.l.b16 %v55
  %v119 = vunpack.c.l.b16 %v56
  %v120 = vunpack.c.l.b16 %v57
  %v121 = vunpack.c.l.b16 %v58
  %v122 = vunpack.c.l.b16 %v59
  %v123 = vunpack.c.l.b16 %v60
  %v124 = vunpack.c.l.b16 %v61
  %v125 = vunpack.c.l.b16 %v62
  %v126 = vunpack.c.l.b16 %v63
  %v127 = vunpack.c.l.b16 %v64
  %v128 = vunpack.c.l.b16 %v65
  %v129 = vunpack.c.l.b16 %v66
  %v130 = vunpack.c.l.b16 %v67
  %v131 = vunpack.c.l.b16 %v68
  %v132 = vpack.c.b16 %v117, %v116
  %v133 = vpack.c.b16 %v119, %v118
  %v134 = vpack.c.b16 %v121, %v120
  %v135 = vpack.c.b16 %v123, %v122
  %v136 = vpack.c.b16 %v125, %v124
  %v137 = vpack.c.b16 %v127, %v126
  %v138 = vpack.c.b16 %v129, %v128
  %v139 = vpack.c.b16 %v131, %v130
  %148 = vmatprep.subr.bf16.mxu0 0
  %149 = vmatpush1.bf16.msra.mxu0 %v132
  %150 = vmatprep.subr.bf16.mxu0 0
  %151 = vmatpush1.bf16.msra.mxu0 %v133
  %152 = vmatprep.subr.bf16.mxu0 0
  %153 = vmatpush1.bf16.msra.mxu0 %v134
  %154 = vmatprep.subr.bf16.mxu0 0
  %155 = vmatpush1.bf16.msra.mxu0 %v135
  %156 = vmatprep.subr.bf16.mxu0 0
  %157 = vmatpush1.bf16.msra.mxu0 %v136
  %158 = vmatprep.subr.bf16.mxu0 0
  %159 = vmatpush1.bf16.msra.mxu0 %v137
  %160 = vmatprep.subr.bf16.mxu0 0
  %161 = vmatpush1.bf16.msra.mxu0 %v138
  %162 = vmatprep.subr.bf16.mxu0 0
  %163 = vmatpush1.bf16.msra.mxu0 %v139
  %164 = vmatprep.subr.bf16.mxu0 0
  %165 = vmatpush1.bf16.msra.mxu0 0
  %166 = vmatprep.subr.bf16.mxu0 0
  %167 = vmatpush1.bf16.msra.mxu0 0
  %168 = vmatprep.subr.bf16.mxu0 0
  %169 = vmatpush1.bf16.msra.mxu0 0
  %170 = vmatprep.subr.bf16.mxu0 0
  %171 = vmatpush1.bf16.msra.mxu0 0
  %172 = vmatprep.subr.bf16.mxu0 0
  %173 = vmatpush1.bf16.msra.mxu0 0
  %174 = vmatprep.subr.bf16.mxu0 0
  %175 = vmatpush1.bf16.msra.mxu0 0
  %176 = vmatprep.subr.bf16.mxu0 0
  %177 = vmatpush1.bf16.msra.mxu0 0
  %178 = vmatprep.subr.bf16.mxu0 0
  %179 = vmatpush1.bf16.msra.mxu0 0
  %180 = vmatprep.mubr.bf16.mxu0 0
  %181 = vmatmul.mubr.bf16.gmra.mrb[0].mxu0 %v92
  %v182 = vpop.f32.mrb[0].mxu0
  %v183 = vadd.f32 %v74, %v182
  %v184 = vpop.f32.mrb[0].mxu0
  %v185 = vpop.f32.mrb[0].mxu0
  %v186 = vadd.f32 %v74, %v185
  %v187 = vpop.f32.mrb[0].mxu0
  %188 = vmatprep.mubr.bf16.mxu0 0
  %189 = vmatmul.mubr.bf16.gmra.mrb[0].mxu0 %v93
  %v190 = vpop.f32.mrb[0].mxu0
  %v191 = vadd.f32 %v74, %v190
  %v192 = vpop.f32.mrb[0].mxu0
  %v193 = vpop.f32.mrb[0].mxu0
  %v194 = vadd.f32 %v74, %v193
  %v195 = vpop.f32.mrb[0].mxu0
  %196 = vmatprep.mubr.bf16.mxu0 0
  %197 = vmatmul.mubr.bf16.gmra.mrb[0].mxu0 %v94
  %v198 = vpop.f32.mrb[0].mxu0
  %v199 = vadd.f32 %v74, %v198
  %v200 = vpop.f32.mrb[0].mxu0
  %v201 = vpop.f32.mrb[0].mxu0
  %v202 = vadd.f32 %v74, %v201
  %v203 = vpop.f32.mrb[0].mxu0
  %204 = vmatprep.mubr.bf16.mxu0 0
  %205 = vmatmul.mubr.bf16.gmra.mrb[0].mxu0 %v95
  %v206 = vpop.f32.mrb[0].mxu0
  %v207 = vadd.f32 %v74, %v206
  %v208 = vpop.f32.mrb[0].mxu0
  %v209 = vpop.f32.mrb[0].mxu0
  %v210 = vadd.f32 %v74, %v209
  %v211 = vpop.f32.mrb[0].mxu0
  %212 = vdwg.mxu0
  %v213 = vmax.f32 %v183, 0.0
  %v214 = vmax.f32 %v186, 0.0
  %v215 = vmax.f32 %v191, 0.0
  %v216 = vmax.f32 %v194, 0.0
  %v217 = vmax.f32 %v199, 0.0
  %v218 = vmax.f32 %v202, 0.0
  %v219 = vmax.f32 %v207, 0.0
  %v220 = vmax.f32 %v210, 0.0
  %v221 = vpack.c.bf16 %v214, %v213
  %v222 = vpack.c.bf16 %v216, %v215
  %v223 = vpack.c.bf16 %v218, %v217
  %v224 = vpack.c.bf16 %v220, %v219
  %v225 = vld [vmem:[%s3] sm:$0xf]
  %v226 = vld [vmem:[%s3 + $0x4] sm:$0xf]
  %v227 = vld [vmem:[%s3 + $0x8] sm:$0xf]
  %v228 = vld [vmem:[%s3 + $0xc] sm:$0xf]
  %v229 = vld [vmem:[%s3 + $0x10] sm:$0xf]
  %v230 = vld [vmem:[%s3 + $0x14] sm:$0xf]
  %v231 = vld [vmem:[%s3 + $0x18] sm:$0xf]
  %v232 = vld [vmem:[%s3 + $0x1c] sm:$0xf]
  %v233 = vld [vmem:[%s4] sm:$0x1]
  %v235 = vlaneseq
  %v236 = vshrl.u32 %v235, 7
  %v237 = vsub.s32 0, %v236
  %v238 = vrot.slane %v233, %v237
  %v248 = vunpack.c.l.b16 %v225
  %v249 = vunpack.c.l.b16 %v226
  %v250 = vunpack.c.l.b16 %v227
  %v251 = vunpack.c.l.b16 %v228
  %v252 = vunpack.c.l.b16 %v229
  %v253 = vunpack.c.l.b16 %v230
  %v254 = vunpack.c.l.b16 %v231
  %v255 = vunpack.c.l.b16 %v232
  %v256 = vpack.c.b16 %v249, %v248
  %v257 = vpack.c.b16 %v251, %v250
  %v258 = vpack.c.b16 %v253, %v252
  %v259 = vpack.c.b16 %v255, %v254
  %vm264 = vcmask 523264
  %v266 = vsel %vm264, %v221, 0
  %v269 = vsel %vm264, %v222, 0
  %v272 = vsel %vm264, %v223, 0
  %v275 = vsel %vm264, %v224, 0
  %277 = vmatprep.subr.bf16.mxu0 0
  %278 = vmatpush1.bf16.msra.mxu0 %v256
  %279 = vmatprep.subr.bf16.mxu0 0
  %280 = vmatpush1.bf16.msra.mxu0 %v257
  %281 = vmatprep.subr.bf16.mxu0 0
  %282 = vmatpush1.bf16.msra.mxu0 %v258
  %283 = vmatprep.subr.bf16.mxu0 0
  %284 = vmatpush1.bf16.msra.mxu0 %v259
  %285 = vmatprep.subr.bf16.mxu0 0
  %286 = vmatpush1.bf16.msra.mxu0 0
  %287 = vmatprep.subr.bf16.mxu0 0
  %288 = vmatpush1.bf16.msra.mxu0 0
  %289 = vmatprep.subr.bf16.mxu0 0
  %290 = vmatpush1.bf16.msra.mxu0 0
  %291 = vmatprep.subr.bf16.mxu0 0
  %292 = vmatpush1.bf16.msra.mxu0 0
  %293 = vmatprep.subr.bf16.mxu0 0
  %294 = vmatpush1.bf16.msra.mxu0 0
  %295 = vmatprep.subr.bf16.mxu0 0
  %296 = vmatpush1.bf16.msra.mxu0 0
  %297 = vmatprep.subr.bf16.mxu0 0
  %298 = vmatpush1.bf16.msra.mxu0 0
  %299 = vmatprep.subr.bf16.mxu0 0
  %300 = vmatpush1.bf16.msra.mxu0 0
  %301 = vmatprep.subr.bf16.mxu0 0
  %302 = vmatpush1.bf16.msra.mxu0 0
  %303 = vmatprep.subr.bf16.mxu0 0
  %304 = vmatpush1.bf16.msra.mxu0 0
  %305 = vmatprep.subr.bf16.mxu0 0
  %306 = vmatpush1.bf16.msra.mxu0 0
  %307 = vmatprep.subr.bf16.mxu0 0
  %308 = vmatpush1.bf16.msra.mxu0 0
  %309 = vmatprep.mubr.bf16.mxu0 0
  %310 = vmatmul.mubr.bf16.gmra.mrb[0].mxu0 %v266
  %v311 = vpop.f32.mrb[0].mxu0
  %v312 = vadd.f32 %v238, %v311
  %v313 = vpop.f32.mrb[0].mxu0
  %v314 = vpop.f32.mrb[0].mxu0
  %v315 = vadd.f32 %v238, %v314
  %v316 = vpop.f32.mrb[0].mxu0
  %317 = vmatprep.mubr.bf16.mxu0 0
  %318 = vmatmul.mubr.bf16.gmra.mrb[0].mxu0 %v269
  %v319 = vpop.f32.mrb[0].mxu0
  %v320 = vadd.f32 %v238, %v319
  %v321 = vpop.f32.mrb[0].mxu0
  %v322 = vpop.f32.mrb[0].mxu0
  %v323 = vadd.f32 %v238, %v322
  %v324 = vpop.f32.mrb[0].mxu0
  %325 = vmatprep.mubr.bf16.mxu0 0
  %326 = vmatmul.mubr.bf16.gmra.mrb[0].mxu0 %v272
  %v327 = vpop.f32.mrb[0].mxu0
  %v328 = vadd.f32 %v238, %v327
  %v329 = vpop.f32.mrb[0].mxu0
  %v330 = vpop.f32.mrb[0].mxu0
  %v331 = vadd.f32 %v238, %v330
  %v332 = vpop.f32.mrb[0].mxu0
  %333 = vmatprep.mubr.bf16.mxu0 0
  %334 = vmatmul.mubr.bf16.gmra.mrb[0].mxu0 %v275
  %v335 = vpop.f32.mrb[0].mxu0
  %v336 = vadd.f32 %v238, %v335
  %v337 = vpop.f32.mrb[0].mxu0
  %v338 = vpop.f32.mrb[0].mxu0
  %v339 = vadd.f32 %v238, %v338
  %v340 = vpop.f32.mrb[0].mxu0
  %341 = vdwg.mxu0
  %v342 = vmax.f32 %v312, 0.0
  %v343 = vmax.f32 %v315, 0.0
  %v344 = vmax.f32 %v320, 0.0
  %v345 = vmax.f32 %v323, 0.0
  %v346 = vmax.f32 %v328, 0.0
  %v347 = vmax.f32 %v331, 0.0
  %v348 = vmax.f32 %v336, 0.0
  %v349 = vmax.f32 %v339, 0.0
  %v350 = vpack.c.bf16 %v343, %v342
  %v351 = vpack.c.bf16 %v345, %v344
  %v352 = vpack.c.bf16 %v347, %v346
  %v353 = vpack.c.bf16 %v349, %v348
  %v354 = vld [vmem:[%s5] sm:$0xf]
  %v355 = vld [vmem:[%s5 + $0x4] sm:$0xf]
  %v356 = vld [vmem:[%s5 + $0x8] sm:$0xf]
  %v357 = vld [vmem:[%s5 + $0xc] sm:$0xf]
  %v358 = vld [vmem:[%s6] sm:$0x1]
  %v360 = vlaneseq
  %v361 = vshrl.u32 %v360, 7
  %v362 = vsub.s32 0, %v361
  %v363 = vrot.slane %v358, %v362
  %v369 = vunpack.c.l.b16 %v354
  %v370 = vunpack.c.l.b16 %v355
  %v371 = vunpack.c.l.b16 %v356
  %v372 = vunpack.c.l.b16 %v357
  %v373 = vpack.c.b16 %v370, %v369
  %v374 = vpack.c.b16 %v372, %v371
  %vm377 = vcmask 261120
  %v379 = vsel %vm377, %v350, 0
  %v382 = vsel %vm377, %v351, 0
  %v385 = vsel %vm377, %v352, 0
  %v388 = vsel %vm377, %v353, 0
  %390 = vmatprep.subr.bf16.mxu0 0
  %391 = vmatpush1.bf16.msra.mxu0 %v373
  %392 = vmatprep.subr.bf16.mxu0 0
  %393 = vmatpush1.bf16.msra.mxu0 %v374
  %394 = vmatprep.subr.bf16.mxu0 0
  %395 = vmatpush1.bf16.msra.mxu0 0
  %396 = vmatprep.subr.bf16.mxu0 0
  %397 = vmatpush1.bf16.msra.mxu0 0
  %398 = vmatprep.subr.bf16.mxu0 0
  %399 = vmatpush1.bf16.msra.mxu0 0
  %400 = vmatprep.subr.bf16.mxu0 0
  %401 = vmatpush1.bf16.msra.mxu0 0
  %402 = vmatprep.subr.bf16.mxu0 0
  %403 = vmatpush1.bf16.msra.mxu0 0
  %404 = vmatprep.subr.bf16.mxu0 0
  %405 = vmatpush1.bf16.msra.mxu0 0
  %406 = vmatprep.subr.bf16.mxu0 0
  %407 = vmatpush1.bf16.msra.mxu0 0
  %408 = vmatprep.subr.bf16.mxu0 0
  %409 = vmatpush1.bf16.msra.mxu0 0
  %410 = vmatprep.subr.bf16.mxu0 0
  %411 = vmatpush1.bf16.msra.mxu0 0
  %412 = vmatprep.subr.bf16.mxu0 0
  %413 = vmatpush1.bf16.msra.mxu0 0
  %414 = vmatprep.subr.bf16.mxu0 0
  %415 = vmatpush1.bf16.msra.mxu0 0
  %416 = vmatprep.subr.bf16.mxu0 0
  %417 = vmatpush1.bf16.msra.mxu0 0
  %418 = vmatprep.subr.bf16.mxu0 0
  %419 = vmatpush1.bf16.msra.mxu0 0
  %420 = vmatprep.subr.bf16.mxu0 0
  %421 = vmatpush1.bf16.msra.mxu0 0
  %422 = vmatprep.mubr.bf16.mxu0 0
  %423 = vmatmul.mubr.bf16.gmra.mrb[0].mxu0 %v379
  %v424 = vpop.f32.mrb[0].mxu0
  %v425 = vadd.f32 %v363, %v424
  %v426 = vpop.f32.mrb[0].mxu0
  %v427 = vpop.f32.mrb[0].mxu0
  %v428 = vadd.f32 %v363, %v427
  %v429 = vpop.f32.mrb[0].mxu0
  %430 = vmatprep.mubr.bf16.mxu0 0
  %431 = vmatmul.mubr.bf16.gmra.mrb[0].mxu0 %v382
  %v432 = vpop.f32.mrb[0].mxu0
  %v433 = vadd.f32 %v363, %v432
  %v434 = vpop.f32.mrb[0].mxu0
  %v435 = vpop.f32.mrb[0].mxu0
  %v436 = vadd.f32 %v363, %v435
  %v437 = vpop.f32.mrb[0].mxu0
  %438 = vmatprep.mubr.bf16.mxu0 0
  %439 = vmatmul.mubr.bf16.gmra.mrb[0].mxu0 %v385
  %v440 = vpop.f32.mrb[0].mxu0
  %v441 = vadd.f32 %v363, %v440
  %v442 = vpop.f32.mrb[0].mxu0
  %v443 = vpop.f32.mrb[0].mxu0
  %v444 = vadd.f32 %v363, %v443
  %v445 = vpop.f32.mrb[0].mxu0
  %446 = vmatprep.mubr.bf16.mxu0 0
  %447 = vmatmul.mubr.bf16.gmra.mrb[0].mxu0 %v388
  %v448 = vpop.f32.mrb[0].mxu0
  %v449 = vadd.f32 %v363, %v448
  %v450 = vpop.f32.mrb[0].mxu0
  %v451 = vpop.f32.mrb[0].mxu0
  %v452 = vadd.f32 %v363, %v451
  %v453 = vpop.f32.mrb[0].mxu0
  %454 = vdwg.mxu0
  %v455 = vpack.c.bf16 %v428, %v425
  %v456 = vpack.c.bf16 %v436, %v433
  %v457 = vpack.c.bf16 %v444, %v441
  %v458 = vpack.c.bf16 %v452, %v449
  %v459 = vld [vmem:[%s7] sm:$0xf]
  %v460 = vld [vmem:[%s7 + $0x4] sm:$0xf]
  %v461 = vld [vmem:[%s8] sm:$0x1]
  %v463 = vlaneseq
  %v464 = vshrl.u32 %v463, 7
  %v465 = vsub.s32 0, %v464
  %v466 = vrot.slane %v461, %v465
  %v470 = vunpack.c.l.b16 %v459
  %v471 = vunpack.c.l.b16 %v460
  %v472 = vpack.c.b16 %v471, %v470
  %vm474 = vcmask 130048
  %v476 = vsel %vm474, %v455, 0
  %v479 = vsel %vm474, %v456, 0
  %v482 = vsel %vm474, %v457, 0
  %v485 = vsel %vm474, %v458, 0
  %487 = vmatprep.subr.bf16.mxu0 0
  %488 = vmatpush1.bf16.msra.mxu0 %v472
  %489 = vmatprep.subr.bf16.mxu0 0
  %490 = vmatpush1.bf16.msra.mxu0 0
  %491 = vmatprep.subr.bf16.mxu0 0
  %492 = vmatpush1.bf16.msra.mxu0 0
  %493 = vmatprep.subr.bf16.mxu0 0
  %494 = vmatpush1.bf16.msra.mxu0 0
  %495 = vmatprep.subr.bf16.mxu0 0
  %496 = vmatpush1.bf16.msra.mxu0 0
  %497 = vmatprep.subr.bf16.mxu0 0
  %498 = vmatpush1.bf16.msra.mxu0 0
  %499 = vmatprep.subr.bf16.mxu0 0
  %500 = vmatpush1.bf16.msra.mxu0 0
  %501 = vmatprep.subr.bf16.mxu0 0
  %502 = vmatpush1.bf16.msra.mxu0 0
  %503 = vmatprep.subr.bf16.mxu0 0
  %504 = vmatpush1.bf16.msra.mxu0 0
  %505 = vmatprep.subr.bf16.mxu0 0
  %506 = vmatpush1.bf16.msra.mxu0 0
  %507 = vmatprep.subr.bf16.mxu0 0
  %508 = vmatpush1.bf16.msra.mxu0 0
  %509 = vmatprep.subr.bf16.mxu0 0
  %510 = vmatpush1.bf16.msra.mxu0 0
  %511 = vmatprep.subr.bf16.mxu0 0
  %512 = vmatpush1.bf16.msra.mxu0 0
  %513 = vmatprep.subr.bf16.mxu0 0
  %514 = vmatpush1.bf16.msra.mxu0 0
  %515 = vmatprep.subr.bf16.mxu0 0
  %516 = vmatpush1.bf16.msra.mxu0 0
  %517 = vmatprep.subr.bf16.mxu0 0
  %518 = vmatpush1.bf16.msra.mxu0 0
  %519 = vmatprep.mubr.bf16.mxu0 0
  %520 = vmatmul.mubr.bf16.gmra.mrb[0].mxu0 %v476
  %v521 = vpop.f32.mrb[0].mxu0
  %v522 = vadd.f32 %v466, %v521
  %v523 = vpop.f32.mrb[0].mxu0
  %v524 = vpop.f32.mrb[0].mxu0
  %v525 = vadd.f32 %v466, %v524
  %v526 = vpop.f32.mrb[0].mxu0
  %527 = vmatprep.mubr.bf16.mxu0 0
  %528 = vmatmul.mubr.bf16.gmra.mrb[0].mxu0 %v479
  %v529 = vpop.f32.mrb[0].mxu0
  %v530 = vadd.f32 %v466, %v529
  %v531 = vpop.f32.mrb[0].mxu0
  %v532 = vpop.f32.mrb[0].mxu0
  %v533 = vadd.f32 %v466, %v532
  %v534 = vpop.f32.mrb[0].mxu0
  %535 = vmatprep.mubr.bf16.mxu0 0
  %536 = vmatmul.mubr.bf16.gmra.mrb[0].mxu0 %v482
  %v537 = vpop.f32.mrb[0].mxu0
  %v538 = vadd.f32 %v466, %v537
  %v539 = vpop.f32.mrb[0].mxu0
  %v540 = vpop.f32.mrb[0].mxu0
  %v541 = vadd.f32 %v466, %v540
  %v542 = vpop.f32.mrb[0].mxu0
  %543 = vmatprep.mubr.bf16.mxu0 0
  %544 = vmatmul.mubr.bf16.gmra.mrb[0].mxu0 %v485
  %v545 = vpop.f32.mrb[0].mxu0
  %v546 = vadd.f32 %v466, %v545
  %v547 = vpop.f32.mrb[0].mxu0
  %v548 = vpop.f32.mrb[0].mxu0
  %v549 = vadd.f32 %v466, %v548
  %v550 = vpop.f32.mrb[0].mxu0
  %551 = vdwg.mxu0
  %v552 = vmax.f32 %v522, 0.0
  %v553 = vmax.f32 %v525, 0.0
  %v554 = vmax.f32 %v530, 0.0
  %v555 = vmax.f32 %v533, 0.0
  %v556 = vmax.f32 %v538, 0.0
  %v557 = vmax.f32 %v541, 0.0
  %v558 = vmax.f32 %v546, 0.0
  %v559 = vmax.f32 %v549, 0.0
  %v560 = vpack.c.bf16 %v553, %v552
  %v561 = vpack.c.bf16 %v555, %v554
  %v562 = vpack.c.bf16 %v557, %v556
  %v563 = vpack.c.bf16 %v559, %v558
  %v564 = vld [vmem:[%s9] sm:$0xf]
  %v565 = vld [vmem:[%s9 + $0x4] sm:$0xf]
  %v566 = vld [vmem:[%s9 + $0x8] sm:$0xf]
  %v567 = vld [vmem:[%s9 + $0xc] sm:$0xf]
  %v568 = vld [vmem:[%s10] sm:$0x1]
  %v570 = vlaneseq
  %v571 = vshrl.u32 %v570, 7
  %v572 = vsub.s32 0, %v571
  %v573 = vrot.slane %v568, %v572
  %v579 = vunpack.c.l.b16 %v564
  %v580 = vunpack.c.l.b16 %v565
  %v581 = vunpack.c.l.b16 %v566
  %v582 = vunpack.c.l.b16 %v567
  %v583 = vpack.c.b16 %v580, %v579
  %v584 = vpack.c.b16 %v582, %v581
  %v588 = vsel %vm377, %v560, 0
  %v591 = vsel %vm377, %v561, 0
  %v594 = vsel %vm377, %v562, 0
  %v597 = vsel %vm377, %v563, 0
  %599 = vmatprep.subr.bf16.mxu0 0
  %600 = vmatpush1.bf16.msra.mxu0 %v583
  %601 = vmatprep.subr.bf16.mxu0 0
  %602 = vmatpush1.bf16.msra.mxu0 %v584
  %603 = vmatprep.subr.bf16.mxu0 0
  %604 = vmatpush1.bf16.msra.mxu0 0
  %605 = vmatprep.subr.bf16.mxu0 0
  %606 = vmatpush1.bf16.msra.mxu0 0
  %607 = vmatprep.subr.bf16.mxu0 0
  %608 = vmatpush1.bf16.msra.mxu0 0
  %609 = vmatprep.subr.bf16.mxu0 0
  %610 = vmatpush1.bf16.msra.mxu0 0
  %611 = vmatprep.subr.bf16.mxu0 0
  %612 = vmatpush1.bf16.msra.mxu0 0
  %613 = vmatprep.subr.bf16.mxu0 0
  %614 = vmatpush1.bf16.msra.mxu0 0
  %615 = vmatprep.subr.bf16.mxu0 0
  %616 = vmatpush1.bf16.msra.mxu0 0
  %617 = vmatprep.subr.bf16.mxu0 0
  %618 = vmatpush1.bf16.msra.mxu0 0
  %619 = vmatprep.subr.bf16.mxu0 0
  %620 = vmatpush1.bf16.msra.mxu0 0
  %621 = vmatprep.subr.bf16.mxu0 0
  %622 = vmatpush1.bf16.msra.mxu0 0
  %623 = vmatprep.subr.bf16.mxu0 0
  %624 = vmatpush1.bf16.msra.mxu0 0
  %625 = vmatprep.subr.bf16.mxu0 0
  %626 = vmatpush1.bf16.msra.mxu0 0
  %627 = vmatprep.subr.bf16.mxu0 0
  %628 = vmatpush1.bf16.msra.mxu0 0
  %629 = vmatprep.subr.bf16.mxu0 0
  %630 = vmatpush1.bf16.msra.mxu0 0
  %631 = vmatprep.mubr.bf16.mxu0 0
  %632 = vmatmul.mubr.bf16.gmra.mrb[0].mxu0 %v588
  %v633 = vpop.f32.mrb[0].mxu0
  %v634 = vadd.f32 %v573, %v633
  %v635 = vpop.f32.mrb[0].mxu0
  %v636 = vpop.f32.mrb[0].mxu0
  %v637 = vadd.f32 %v573, %v636
  %v638 = vpop.f32.mrb[0].mxu0
  %639 = vmatprep.mubr.bf16.mxu0 0
  %640 = vmatmul.mubr.bf16.gmra.mrb[0].mxu0 %v591
  %v641 = vpop.f32.mrb[0].mxu0
  %v642 = vadd.f32 %v573, %v641
  %v643 = vpop.f32.mrb[0].mxu0
  %v644 = vpop.f32.mrb[0].mxu0
  %v645 = vadd.f32 %v573, %v644
  %v646 = vpop.f32.mrb[0].mxu0
  %647 = vmatprep.mubr.bf16.mxu0 0
  %648 = vmatmul.mubr.bf16.gmra.mrb[0].mxu0 %v594
  %v649 = vpop.f32.mrb[0].mxu0
  %v650 = vadd.f32 %v573, %v649
  %v651 = vpop.f32.mrb[0].mxu0
  %v652 = vpop.f32.mrb[0].mxu0
  %v653 = vadd.f32 %v573, %v652
  %v654 = vpop.f32.mrb[0].mxu0
  %655 = vmatprep.mubr.bf16.mxu0 0
  %656 = vmatmul.mubr.bf16.gmra.mrb[0].mxu0 %v597
  %v657 = vpop.f32.mrb[0].mxu0
  %v658 = vadd.f32 %v573, %v657
  %v659 = vpop.f32.mrb[0].mxu0
  %v660 = vpop.f32.mrb[0].mxu0
  %v661 = vadd.f32 %v573, %v660
  %v662 = vpop.f32.mrb[0].mxu0
  %663 = vdwg.mxu0
  %v664 = vmax.f32 %v634, 0.0
  %v665 = vmax.f32 %v637, 0.0
  %v666 = vmax.f32 %v642, 0.0
  %v667 = vmax.f32 %v645, 0.0
  %v668 = vmax.f32 %v650, 0.0
  %v669 = vmax.f32 %v653, 0.0
  %v670 = vmax.f32 %v658, 0.0
  %v671 = vmax.f32 %v661, 0.0
  %v672 = vpack.c.bf16 %v665, %v664
  %v673 = vpack.c.bf16 %v667, %v666
  %v674 = vpack.c.bf16 %v669, %v668
  %v675 = vpack.c.bf16 %v671, %v670
  %v676 = vld [vmem:[%s11] sm:$0xf]
  %v677 = vld [vmem:[%s11 + $0x4] sm:$0xf]
  %v678 = vld [vmem:[%s11 + $0x8] sm:$0xf]
  %v679 = vld [vmem:[%s11 + $0xc] sm:$0xf]
  %v680 = vld [vmem:[%s11 + $0x10] sm:$0xf]
  %v681 = vld [vmem:[%s11 + $0x14] sm:$0xf]
  %v682 = vld [vmem:[%s11 + $0x18] sm:$0xf]
  %v683 = vld [vmem:[%s11 + $0x1c] sm:$0xf]
  %v684 = vld [vmem:[%s12] sm:$0x1]
  %v686 = vlaneseq
  %v687 = vshrl.u32 %v686, 7
  %v688 = vsub.s32 0, %v687
  %v689 = vrot.slane %v684, %v688
  %v699 = vunpack.c.l.b16 %v676
  %v700 = vunpack.c.l.b16 %v677
  %v701 = vunpack.c.l.b16 %v678
  %v702 = vunpack.c.l.b16 %v679
  %v703 = vunpack.c.l.b16 %v680
  %v704 = vunpack.c.l.b16 %v681
  %v705 = vunpack.c.l.b16 %v682
  %v706 = vunpack.c.l.b16 %v683
  %v707 = vpack.c.b16 %v700, %v699
  %v708 = vpack.c.b16 %v702, %v701
  %v709 = vpack.c.b16 %v704, %v703
  %v710 = vpack.c.b16 %v706, %v705
  %v716 = vsel %vm264, %v672, 0
  %v719 = vsel %vm264, %v673, 0
  %v722 = vsel %vm264, %v674, 0
  %v725 = vsel %vm264, %v675, 0
  %727 = vmatprep.subr.bf16.mxu0 0
  %728 = vmatpush1.bf16.msra.mxu0 %v707
  %729 = vmatprep.subr.bf16.mxu0 0
  %730 = vmatpush1.bf16.msra.mxu0 %v708
  %731 = vmatprep.subr.bf16.mxu0 0
  %732 = vmatpush1.bf16.msra.mxu0 %v709
  %733 = vmatprep.subr.bf16.mxu0 0
  %734 = vmatpush1.bf16.msra.mxu0 %v710
  %735 = vmatprep.subr.bf16.mxu0 0
  %736 = vmatpush1.bf16.msra.mxu0 0
  %737 = vmatprep.subr.bf16.mxu0 0
  %738 = vmatpush1.bf16.msra.mxu0 0
  %739 = vmatprep.subr.bf16.mxu0 0
  %740 = vmatpush1.bf16.msra.mxu0 0
  %741 = vmatprep.subr.bf16.mxu0 0
  %742 = vmatpush1.bf16.msra.mxu0 0
  %743 = vmatprep.subr.bf16.mxu0 0
  %744 = vmatpush1.bf16.msra.mxu0 0
  %745 = vmatprep.subr.bf16.mxu0 0
  %746 = vmatpush1.bf16.msra.mxu0 0
  %747 = vmatprep.subr.bf16.mxu0 0
  %748 = vmatpush1.bf16.msra.mxu0 0
  %749 = vmatprep.subr.bf16.mxu0 0
  %750 = vmatpush1.bf16.msra.mxu0 0
  %751 = vmatprep.subr.bf16.mxu0 0
  %752 = vmatpush1.bf16.msra.mxu0 0
  %753 = vmatprep.subr.bf16.mxu0 0
  %754 = vmatpush1.bf16.msra.mxu0 0
  %755 = vmatprep.subr.bf16.mxu0 0
  %756 = vmatpush1.bf16.msra.mxu0 0
  %757 = vmatprep.subr.bf16.mxu0 0
  %758 = vmatpush1.bf16.msra.mxu0 0
  %759 = vmatprep.mubr.bf16.mxu0 0
  %760 = vmatmul.mubr.bf16.gmra.mrb[0].mxu0 %v716
  %v761 = vpop.f32.mrb[0].mxu0
  %v762 = vadd.f32 %v689, %v761
  %v763 = vpop.f32.mrb[0].mxu0
  %v764 = vpop.f32.mrb[0].mxu0
  %v765 = vadd.f32 %v689, %v764
  %v766 = vpop.f32.mrb[0].mxu0
  %767 = vmatprep.mubr.bf16.mxu0 0
  %768 = vmatmul.mubr.bf16.gmra.mrb[0].mxu0 %v719
  %v769 = vpop.f32.mrb[0].mxu0
  %v770 = vadd.f32 %v689, %v769
  %v771 = vpop.f32.mrb[0].mxu0
  %v772 = vpop.f32.mrb[0].mxu0
  %v773 = vadd.f32 %v689, %v772
  %v774 = vpop.f32.mrb[0].mxu0
  %775 = vmatprep.mubr.bf16.mxu0 0
  %776 = vmatmul.mubr.bf16.gmra.mrb[0].mxu0 %v722
  %v777 = vpop.f32.mrb[0].mxu0
  %v778 = vadd.f32 %v689, %v777
  %v779 = vpop.f32.mrb[0].mxu0
  %v780 = vpop.f32.mrb[0].mxu0
  %v781 = vadd.f32 %v689, %v780
  %v782 = vpop.f32.mrb[0].mxu0
  %783 = vmatprep.mubr.bf16.mxu0 0
  %784 = vmatmul.mubr.bf16.gmra.mrb[0].mxu0 %v725
  %v785 = vpop.f32.mrb[0].mxu0
  %v786 = vadd.f32 %v689, %v785
  %v787 = vpop.f32.mrb[0].mxu0
  %v788 = vpop.f32.mrb[0].mxu0
  %v789 = vadd.f32 %v689, %v788
  %v790 = vpop.f32.mrb[0].mxu0
  %791 = vdwg.mxu0
  %v792 = vsub.f32 0.0, %v762
  %v793 = vsub.f32 0.0, %v765
  %v794 = vsub.f32 0.0, %v770
  %v795 = vsub.f32 0.0, %v773
  %v796 = vsub.f32 0.0, %v778
  %v797 = vsub.f32 0.0, %v781
  %v798 = vsub.f32 0.0, %v786
  %v799 = vsub.f32 0.0, %v789
  %v800 = vmul.f32 %v792, 1.442695
  %v801 = vpow.pop %v800
  %v802 = vmul.f32 %v793, 1.442695
  %v803 = vpow.pop %v802
  %v804 = vmul.f32 %v794, 1.442695
  %v805 = vpow.pop %v804
  %v806 = vmul.f32 %v795, 1.442695
  %v807 = vpow.pop %v806
  %v808 = vmul.f32 %v796, 1.442695
  %v809 = vpow.pop %v808
  %v810 = vmul.f32 %v797, 1.442695
  %v811 = vpow.pop %v810
  %v812 = vmul.f32 %v798, 1.442695
  %v813 = vpow.pop %v812
  %v814 = vmul.f32 %v799, 1.442695
  %v815 = vpow.pop %v814
  %v816 = vadd.f32 %v801, 1.0
  %v817 = vadd.f32 %v803, 1.0
  %v818 = vadd.f32 %v805, 1.0
  %v819 = vadd.f32 %v807, 1.0
  %v820 = vadd.f32 %v809, 1.0
  %v821 = vadd.f32 %v811, 1.0
  %v822 = vadd.f32 %v813, 1.0
  %v823 = vadd.f32 %v815, 1.0
  %v824 = vrcp.pop %v816
  %v825 = vrcp.pop %v817
  %v826 = vrcp.pop %v818
  %v827 = vrcp.pop %v819
  %v828 = vrcp.pop %v820
  %v829 = vrcp.pop %v821
  %v830 = vrcp.pop %v822
  %v831 = vrcp.pop %v823
  %832 = vst [vmem:[%s13] sm:$0xff] %v824
  %833 = vst [vmem:[%s13 + $0x8] sm:$0xff] %v825
  %834 = vst [vmem:[%s13 + $0x10] sm:$0xff] %v826
  %835 = vst [vmem:[%s13 + $0x18] sm:$0xff] %v827
  %836 = vst [vmem:[%s13 + $0x20] sm:$0xff] %v828
  %837 = vst [vmem:[%s13 + $0x28] sm:$0xff] %v829
  %838 = vst [vmem:[%s13 + $0x30] sm:$0xff] %v830
  %839 = vst [vmem:[%s13 + $0x38] sm:$0xff] %v831
  // Predicated region
  $region54: #{autoencoder_forward.1} parent=0 // pred_check
    _
  $region55: #{autoencoder_forward.1} parent=0 // pred_check_branch
    %841 = sbr.rel (0) target = $region57
  $region56: #{autoencoder_forward.1} parent=0 // pred_region
    _
  $region57: #{autoencoder_forward.1} parent=0 // pred_fallthru
    _
  // Predicated region
  $region58: #{autoencoder_forward.1} parent=0 // pred_check
    _
  $region59: #{autoencoder_forward.1} parent=0 // pred_check_branch
    %843 = sbr.rel (0) target = $region61
  $region60: #{autoencoder_forward.1} parent=0 // pred_region
    _
  $region61: #{autoencoder_forward.1} parent=0 // pred_fallthru
    _

</llo_original>
